<compile_context>
chip_gen: v7x
topology: tpu7x:2x2x1
jax: 0.10.0
libtpu: 0.0.40
codegen_flags: <defaults>
</compile_context>

<pallas_src>
import functools

import jax
import jax.numpy as jnp
from jax.experimental import pallas as pl
from jax.experimental.pallas import tpu as pltpu

HIDDEN_DIM = 30          # hyperparas['hidden_dim']
BLOCK_LAYER_NUMS = 3     # hyperparas['block_layer_nums'] -> 2 (Linear+LN+ReLU) stages
LN_EPS = 1e-5
LANE = 128
SUBLANE = 8


def _round_up(x, m):
    return ((x + m - 1) // m) * m


def _resnet_block_kernel(x_ref, w_ref, b_ref, g_ref, beta_ref, o_ref, *,
                         num_stages, d_valid, dp):
    """One batch tile of the ResNet block.

    x_ref:    (tm, D)       un-padded input tile (D == d_valid == 30)
    w_ref:    (L, Dp, Dp)   stacked Linear weights, pre-transposed to (in, out),
                            zero-padded to Dp lanes, in the matmul dtype
    b_ref:    (L, Dp)       stacked Linear biases      (padded lanes are 0)
    g_ref:    (L, Dp)       stacked LayerNorm gammas   (padded lanes are 0)
    beta_ref: (L, Dp)       stacked LayerNorm betas    (padded lanes are 0)
    o_ref:    (tm, D)       un-padded output tile
    """
    x = x_ref[...]                                       # f32 (tm, D)
    inv_n = jnp.float32(1.0 / d_valid)
    # Ones "matvec" RHS: lane-axis sums run on the MXU instead of the XLU.
    ones_col = jnp.ones((dp, 8), jnp.float32)

    out = x
    for i in range(num_stages):
        w = w_ref[i]                                     # (Dp, Dp), (in, out) layout
        if i == 0:
            w = w[:d_valid, :]                           # contract over the 30 real inputs
        b2 = b_ref[i:i + 1, :]                           # (1, Dp) hoisted broadcasts
        g2 = g_ref[i:i + 1, :]
        beta2 = beta_ref[i:i + 1, :]

        h = jnp.dot(out.astype(w.dtype), w,
                    preferred_element_type=jnp.float32) + b2      # (tm, Dp) f32
        # LayerNorm over the d_valid real lanes.  Padded lanes of h are exactly
        # 0 (zero weight columns + zero bias), so plain lane sums are already
        # the masked sums; statistics via MXU matvecs, var = E[h^2] - mean^2.
        s1 = jnp.dot(h, ones_col, preferred_element_type=jnp.float32)[:, :1]
        s2 = jnp.dot(h * h, ones_col, preferred_element_type=jnp.float32)[:, :1]
        mean = s1 * inv_n                                 # (tm, 1)
        var = s2 * inv_n - mean * mean
        hn = (h - mean) * jax.lax.rsqrt(var + LN_EPS)     # EUP rsqrt
        hn = hn * g2 + beta2                              # padded lanes -> 0
        out = jnp.maximum(hn, 0.0)                        # ReLU, (tm, Dp)

    o_ref[...] = (x + out[:, :d_valid]).astype(o_ref.dtype)       # residual


def resnet_block_forward(x, weights, biases, gammas, betas, *,
                         tm=2048, matmul_dtype=jnp.bfloat16):
    """x: (B, D) f32. weights: (L, D, D) in PyTorch (out, in) layout;
    biases/gammas/betas: (L, D)."""
    B, D = x.shape
    L = weights.shape[0]
    Dp = max(LANE, _round_up(D, LANE))

    # Batch tile: big enough to amortize the ~0.35us/step grid overhead, but
    # capped so the "parallel" batch axis has >= 2 steps (feeds both v7x TCs).
    tm = max(SUBLANE, min(tm, _round_up(pl.cdiv(B, 2), SUBLANE)))
    if tm >= B:
        tm = B            # single full-batch block (legal even if B % 8 != 0)
    grid = (pl.cdiv(B, tm),)

    # Pad only the tiny, VMEM-resident params to lane-dense Dp features.
    pad = Dp - D
    w_p = jnp.pad(jnp.transpose(weights, (0, 2, 1)),     # -> (L, D_in, D_out)
                  ((0, 0), (0, pad), (0, pad))).astype(matmul_dtype)
    b_p = jnp.pad(biases, ((0, 0), (0, pad)))
    g_p = jnp.pad(gammas, ((0, 0), (0, pad)))
    beta_p = jnp.pad(betas, ((0, 0), (0, pad)))

    kernel = functools.partial(_resnet_block_kernel,
                               num_stages=L, d_valid=D, dp=Dp)
    param_spec = pl.BlockSpec(memory_space=pltpu.MemorySpace.VMEM)  # resident whole array

    return pl.pallas_call(
        kernel,
        out_shape=jax.ShapeDtypeStruct((B, D), x.dtype),
        grid_spec=pltpu.PrefetchScalarGridSpec(
            num_scalar_prefetch=0,
            grid=grid,
            in_specs=[
                pl.BlockSpec((tm, D), lambda i: (i, 0)),   # x tile, un-padded lanes
                param_spec,                                 # weights
                param_spec,                                 # biases
                param_spec,                                 # gammas
                param_spec,                                 # betas
            ],
            out_specs=pl.BlockSpec((tm, D), lambda i: (i, 0)),
        ),
        compiler_params=pltpu.CompilerParams(
            dimension_semantics=("parallel",)),
    )(x, w_p, b_p, g_p, beta_p)


def init_params(key, hidden_dim, block_layer_nums):
    """Deterministic synthetic params matching nn.Linear / nn.LayerNorm shapes."""
    L = block_layer_nums - 1
    kw, kb, kg, kbt = jax.random.split(key, 4)
    bound = 1.0 / jnp.sqrt(hidden_dim)
    weights = jax.random.uniform(
        kw, (L, hidden_dim, hidden_dim), jnp.float32, -bound, bound)
    biases = jax.random.uniform(kb, (L, hidden_dim), jnp.float32, -bound, bound)
    # Non-trivial LN affine params so gamma/beta handling is actually exercised.
    gammas = 1.0 + 0.1 * jax.random.normal(kg, (L, hidden_dim), jnp.float32)
    betas = 0.05 * jax.random.normal(kbt, (L, hidden_dim), jnp.float32)
    return weights, biases, gammas, betas


def reference_forward(x, weights, biases, gammas, betas):
    """Pure-JAX reference of the PyTorch forward."""
    out = x
    for i in range(weights.shape[0]):
        out = out @ weights[i].T + biases[i]
        mean = jnp.mean(out, axis=-1, keepdims=True)
        var = jnp.mean((out - mean) ** 2, axis=-1, keepdims=True)
        out = (out - mean) / jnp.sqrt(var + LN_EPS)
        out = out * gammas[i] + betas[i]
        out = jnp.maximum(out, 0.0)
    return x + out


if __name__ == "__main__":
    key = jax.random.PRNGKey(0)
    k_x, k_x2, k_p = jax.random.split(key, 3)

    weights, biases, gammas, betas = init_params(k_p, HIDDEN_DIM, BLOCK_LAYER_NUMS)

    # Small canonical case.
    batch = 8
    x = jax.random.normal(k_x, (batch, HIDDEN_DIM), jnp.float32)
    ref = reference_forward(x, weights, biases, gammas, betas)

    # Exact-semantics check with f32 matmul operands.
    out_f32 = jax.block_until_ready(
        resnet_block_forward(x, weights, biases, gammas, betas,
                             matmul_dtype=jnp.float32))
    assert out_f32.shape == (batch, HIDDEN_DIM)
    assert jnp.allclose(out_f32, ref, atol=1e-4, rtol=1e-4), \
        "mismatch vs reference (batch=8, f32 matmul)"

    # Perf default: bf16 MXU operands with f32 accumulation (looser tolerance).
    out_bf16 = jax.block_until_ready(
        resnet_block_forward(x, weights, biases, gammas, betas))
    assert out_bf16.shape == (batch, HIDDEN_DIM)
    assert jnp.allclose(out_bf16, ref, atol=1e-1, rtol=5e-2), \
        "mismatch vs reference (batch=8, bf16 matmul)"

    # Ragged batch exercising partial blocks and a multi-step grid.
    batch2 = 50
    x2 = jax.random.normal(k_x2, (batch2, HIDDEN_DIM), jnp.float32)
    ref2 = reference_forward(x2, weights, biases, gammas, betas)

    out2 = jax.block_until_ready(
        resnet_block_forward(x2, weights, biases, gammas, betas,
                             matmul_dtype=jnp.float32))          # default tm -> grid=2
    assert out2.shape == (batch2, HIDDEN_DIM)
    assert jnp.allclose(out2, ref2, atol=1e-4, rtol=1e-4), \
        "mismatch vs reference (batch=50, default tm)"

    out3 = jax.block_until_ready(
        resnet_block_forward(x2, weights, biases, gammas, betas,
                             tm=16, matmul_dtype=jnp.float32))   # grid=4, partial last block
    assert jnp.allclose(out3, ref2, atol=1e-4, rtol=1e-4), \
        "mismatch vs reference (batch=50, tm=16)"

    print("KERNEL_OK")
</pallas_src>

<mosaic_0001>
module attributes {stable_mosaic.version = 11 : i64} {
  func.func @_resnet_block_kernel(%arg0: i32, %arg1: memref<8x30xf32, #tpu.memory_space<vmem>>, %arg2: memref<2x128x128xf32, #tpu.memory_space<vmem>>, %arg3: memref<2x128xf32, #tpu.memory_space<vmem>>, %arg4: memref<2x128xf32, #tpu.memory_space<vmem>>, %arg5: memref<2x128xf32, #tpu.memory_space<vmem>>, %arg6: memref<8x30xf32, #tpu.memory_space<vmem>>) attributes {dimension_semantics = [#tpu.dimension_semantics<parallel>], iteration_bounds = array<i64: 1>, scalar_prefetch = 0 : i64, scratch_operands = 0 : i64, tpu.core_type = #tpu.core_type<tc>, window_params = [{transform_indices = @transform_0, window_bounds = array<i64: 8, 30>}, {pipeline_mode = #tpu.pipeline_mode<synchronous>, transform_indices = @transform_1, window_bounds = array<i64: 2, 128, 128>}, {pipeline_mode = #tpu.pipeline_mode<synchronous>, transform_indices = @transform_2, window_bounds = array<i64: 2, 128>}, {pipeline_mode = #tpu.pipeline_mode<synchronous>, transform_indices = @transform_3, window_bounds = array<i64: 2, 128>}, {pipeline_mode = #tpu.pipeline_mode<synchronous>, transform_indices = @transform_4, window_bounds = array<i64: 2, 128>}, {transform_indices = @transform_5, window_bounds = array<i64: 8, 30>}]} {
    %c0 = arith.constant 0 : index
    %c0_0 = arith.constant 0 : index
    %0 = vector.load %arg1[%c0, %c0_0] : memref<8x30xf32, #tpu.memory_space<vmem>>, vector<8x30xf32>
    %cst = arith.constant 1.000000e+00 : f32
    %1 = vector.broadcast %cst : f32 to vector<128x8xf32>
    %c0_1 = arith.constant 0 : index
    %c0_2 = arith.constant 0 : index
    %c0_3 = arith.constant 0 : index
    %2 = vector.load %arg2[%c0_1, %c0_2, %c0_3] : memref<2x128x128xf32, #tpu.memory_space<vmem>>, vector<1x128x128xf32>
    %3 = vector.shape_cast %2 : vector<1x128x128xf32> to vector<128x128xf32>
    %4 = vector.extract_strided_slice %3 {offsets = [0, 0], sizes = [30, 128], strides = [1, 1]} : vector<128x128xf32> to vector<30x128xf32>
    %c0_4 = arith.constant 0 : index
    %c0_5 = arith.constant 0 : index
    %5 = vector.load %arg3[%c0_4, %c0_5] : memref<2x128xf32, #tpu.memory_space<vmem>>, vector<1x128xf32>
    %c0_6 = arith.constant 0 : index
    %c0_7 = arith.constant 0 : index
    %6 = vector.load %arg4[%c0_6, %c0_7] : memref<2x128xf32, #tpu.memory_space<vmem>>, vector<1x128xf32>
    %c0_8 = arith.constant 0 : index
    %c0_9 = arith.constant 0 : index
    %7 = vector.load %arg5[%c0_8, %c0_9] : memref<2x128xf32, #tpu.memory_space<vmem>>, vector<1x128xf32>
    %cst_10 = arith.constant dense<0.000000e+00> : vector<8x128xf32>
    %8 = tpu.matmul %0, %4, %cst_10 {dimension_numbers = #tpu.dot_dimension_numbers<[1], [0], [0], [1], [0, 0, 1, 1], [], []>} : vector<8x30xf32>, vector<30x128xf32>, vector<8x128xf32> -> vector<8x128xf32>
    %9 = vector.broadcast %5 : vector<1x128xf32> to vector<8x128xf32>
    %10 = arith.addf %8, %9 : vector<8x128xf32>
    %cst_11 = arith.constant dense<0.000000e+00> : vector<8x8xf32>
    %11 = tpu.matmul %10, %1, %cst_11 {dimension_numbers = #tpu.dot_dimension_numbers<[1], [0], [0], [1], [0, 0, 1, 1], [], []>} : vector<8x128xf32>, vector<128x8xf32>, vector<8x8xf32> -> vector<8x8xf32>
    %12 = vector.extract_strided_slice %11 {offsets = [0, 0], sizes = [8, 1], strides = [1, 1]} : vector<8x8xf32> to vector<8x1xf32>
    %13 = arith.mulf %10, %10 : vector<8x128xf32>
    %cst_12 = arith.constant dense<0.000000e+00> : vector<8x8xf32>
    %14 = tpu.matmul %13, %1, %cst_12 {dimension_numbers = #tpu.dot_dimension_numbers<[1], [0], [0], [1], [0, 0, 1, 1], [], []>} : vector<8x128xf32>, vector<128x8xf32>, vector<8x8xf32> -> vector<8x8xf32>
    %15 = vector.extract_strided_slice %14 {offsets = [0, 0], sizes = [8, 1], strides = [1, 1]} : vector<8x8xf32> to vector<8x1xf32>
    %cst_13 = arith.constant 0.0333333351 : f32
    %16 = vector.broadcast %cst_13 : f32 to vector<8x1xf32>
    %17 = arith.mulf %12, %16 : vector<8x1xf32>
    %cst_14 = arith.constant 0.0333333351 : f32
    %18 = vector.broadcast %cst_14 : f32 to vector<8x1xf32>
    %19 = arith.mulf %15, %18 : vector<8x1xf32>
    %20 = arith.mulf %17, %17 : vector<8x1xf32>
    %21 = arith.subf %19, %20 : vector<8x1xf32>
    %22 = vector.broadcast %17 : vector<8x1xf32> to vector<8x128xf32>
    %23 = arith.subf %10, %22 : vector<8x128xf32>
    %cst_15 = arith.constant 9.99999974E-6 : f32
    %24 = vector.broadcast %cst_15 : f32 to vector<8x1xf32>
    %25 = arith.addf %21, %24 : vector<8x1xf32>
    %26 = math.rsqrt %25 : vector<8x1xf32>
    %27 = vector.broadcast %26 : vector<8x1xf32> to vector<8x128xf32>
    %28 = arith.mulf %23, %27 : vector<8x128xf32>
    %29 = vector.broadcast %6 : vector<1x128xf32> to vector<8x128xf32>
    %30 = arith.mulf %28, %29 : vector<8x128xf32>
    %31 = vector.broadcast %7 : vector<1x128xf32> to vector<8x128xf32>
    %32 = arith.addf %30, %31 : vector<8x128xf32>
    %cst_16 = arith.constant 0.000000e+00 : f32
    %33 = vector.broadcast %cst_16 : f32 to vector<8x128xf32>
    %34 = arith.maximumf %32, %33 : vector<8x128xf32>
    %c1 = arith.constant 1 : index
    %c0_17 = arith.constant 0 : index
    %c0_18 = arith.constant 0 : index
    %35 = vector.load %arg2[%c1, %c0_17, %c0_18] : memref<2x128x128xf32, #tpu.memory_space<vmem>>, vector<1x128x128xf32>
    %36 = vector.shape_cast %35 : vector<1x128x128xf32> to vector<128x128xf32>
    %c1_19 = arith.constant 1 : index
    %c0_20 = arith.constant 0 : index
    %37 = vector.load %arg3[%c1_19, %c0_20] : memref<2x128xf32, #tpu.memory_space<vmem>>, vector<1x128xf32>
    %c1_21 = arith.constant 1 : index
    %c0_22 = arith.constant 0 : index
    %38 = vector.load %arg4[%c1_21, %c0_22] : memref<2x128xf32, #tpu.memory_space<vmem>>, vector<1x128xf32>
    %c1_23 = arith.constant 1 : index
    %c0_24 = arith.constant 0 : index
    %39 = vector.load %arg5[%c1_23, %c0_24] : memref<2x128xf32, #tpu.memory_space<vmem>>, vector<1x128xf32>
    %cst_25 = arith.constant dense<0.000000e+00> : vector<8x128xf32>
    %40 = tpu.matmul %34, %36, %cst_25 {dimension_numbers = #tpu.dot_dimension_numbers<[1], [0], [0], [1], [0, 0, 1, 1], [], []>} : vector<8x128xf32>, vector<128x128xf32>, vector<8x128xf32> -> vector<8x128xf32>
    %41 = vector.broadcast %37 : vector<1x128xf32> to vector<8x128xf32>
    %42 = arith.addf %40, %41 : vector<8x128xf32>
    %cst_26 = arith.constant dense<0.000000e+00> : vector<8x8xf32>
    %43 = tpu.matmul %42, %1, %cst_26 {dimension_numbers = #tpu.dot_dimension_numbers<[1], [0], [0], [1], [0, 0, 1, 1], [], []>} : vector<8x128xf32>, vector<128x8xf32>, vector<8x8xf32> -> vector<8x8xf32>
    %44 = vector.extract_strided_slice %43 {offsets = [0, 0], sizes = [8, 1], strides = [1, 1]} : vector<8x8xf32> to vector<8x1xf32>
    %45 = arith.mulf %42, %42 : vector<8x128xf32>
    %cst_27 = arith.constant dense<0.000000e+00> : vector<8x8xf32>
    %46 = tpu.matmul %45, %1, %cst_27 {dimension_numbers = #tpu.dot_dimension_numbers<[1], [0], [0], [1], [0, 0, 1, 1], [], []>} : vector<8x128xf32>, vector<128x8xf32>, vector<8x8xf32> -> vector<8x8xf32>
    %47 = vector.extract_strided_slice %46 {offsets = [0, 0], sizes = [8, 1], strides = [1, 1]} : vector<8x8xf32> to vector<8x1xf32>
    %cst_28 = arith.constant 0.0333333351 : f32
    %48 = vector.broadcast %cst_28 : f32 to vector<8x1xf32>
    %49 = arith.mulf %44, %48 : vector<8x1xf32>
    %cst_29 = arith.constant 0.0333333351 : f32
    %50 = vector.broadcast %cst_29 : f32 to vector<8x1xf32>
    %51 = arith.mulf %47, %50 : vector<8x1xf32>
    %52 = arith.mulf %49, %49 : vector<8x1xf32>
    %53 = arith.subf %51, %52 : vector<8x1xf32>
    %54 = vector.broadcast %49 : vector<8x1xf32> to vector<8x128xf32>
    %55 = arith.subf %42, %54 : vector<8x128xf32>
    %cst_30 = arith.constant 9.99999974E-6 : f32
    %56 = vector.broadcast %cst_30 : f32 to vector<8x1xf32>
    %57 = arith.addf %53, %56 : vector<8x1xf32>
    %58 = math.rsqrt %57 : vector<8x1xf32>
    %59 = vector.broadcast %58 : vector<8x1xf32> to vector<8x128xf32>
    %60 = arith.mulf %55, %59 : vector<8x128xf32>
    %61 = vector.broadcast %38 : vector<1x128xf32> to vector<8x128xf32>
    %62 = arith.mulf %60, %61 : vector<8x128xf32>
    %63 = vector.broadcast %39 : vector<1x128xf32> to vector<8x128xf32>
    %64 = arith.addf %62, %63 : vector<8x128xf32>
    %cst_31 = arith.constant 0.000000e+00 : f32
    %65 = vector.broadcast %cst_31 : f32 to vector<8x128xf32>
    %66 = arith.maximumf %64, %65 : vector<8x128xf32>
    %67 = vector.extract_strided_slice %66 {offsets = [0, 0], sizes = [8, 30], strides = [1, 1]} : vector<8x128xf32> to vector<8x30xf32>
    %68 = arith.addf %0, %67 : vector<8x30xf32>
    %c0_32 = arith.constant 0 : index
    %c0_33 = arith.constant 0 : index
    %69 = vector.load %arg6[%c0_32, %c0_33] : memref<8x30xf32, #tpu.memory_space<vmem>>, vector<8x30xf32>
    tpu.vector_store %arg6[%c0_32, %c0_33], %68 {strides = array<i32>} : memref<8x30xf32, #tpu.memory_space<vmem>>, vector<8x30xf32>,
    return
  }
  func.func @transform_0(%arg0: i32) -> (i32, i32) {
    %c0_i32 = arith.constant 0 : i32
    %c0_i32_0 = arith.constant 0 : i32
    return %arg0, %c0_i32 : i32, i32
  }
  func.func @transform_1(%arg0: i32) -> (i32, i32, i32) {
    %c0_i32 = arith.constant 0 : i32
    %c0_i32_0 = arith.constant 0 : i32
    %c0_i32_1 = arith.constant 0 : i32
    %c0_i32_2 = arith.constant 0 : i32
    return %c0_i32, %c0_i32_0, %c0_i32_1 : i32, i32, i32
  }
  func.func @transform_2(%arg0: i32) -> (i32, i32) {
    %c0_i32 = arith.constant 0 : i32
    %c0_i32_0 = arith.constant 0 : i32
    %c0_i32_1 = arith.constant 0 : i32
    return %c0_i32, %c0_i32_0 : i32, i32
  }
  func.func @transform_3(%arg0: i32) -> (i32, i32) {
    %c0_i32 = arith.constant 0 : i32
    %c0_i32_0 = arith.constant 0 : i32
    %c0_i32_1 = arith.constant 0 : i32
    return %c0_i32, %c0_i32_0 : i32, i32
  }
  func.func @transform_4(%arg0: i32) -> (i32, i32) {
    %c0_i32 = arith.constant 0 : i32
    %c0_i32_0 = arith.constant 0 : i32
    %c0_i32_1 = arith.constant 0 : i32
    return %c0_i32, %c0_i32_0 : i32, i32
  }
  func.func @transform_5(%arg0: i32) -> (i32, i32) {
    %c0_i32 = arith.constant 0 : i32
    %c0_i32_0 = arith.constant 0 : i32
    return %arg0, %c0_i32 : i32, i32
  }
}

</mosaic_0001>

<llo_original>
// kernel: tpu_custom_call.1
$region0: #{tpu_custom_call.1}
  #allocation0 [shape = 'u32[]', space=smem, size = 0x4, offset = 0x4, fixed_abs, tag = 'smem constant byte address 0x4 - core index']
  #allocation1 [shape = 'u32[144,128]{1,0:T(1,128)}', space=vmem, size = 0x12000, scoped, tag = 'internal scratch']
  %s0 = inlined_call_operand.hbm [shape: f32[8,30], index: 0, kind: input, shape index: {}]
  %s1 = inlined_call_operand.hbm [shape: f32[2,128,128], index: 1, kind: input, shape index: {}]
  %s2 = inlined_call_operand.vmem [shape: f32[2,128], index: 2, kind: input, shape index: {}]
  %s3 = inlined_call_operand.vmem [shape: f32[2,128], index: 3, kind: input, shape index: {}]
  %s4 = inlined_call_operand.vmem [shape: f32[2,128], index: 4, kind: input, shape index: {}]
  %s5 = inlined_call_operand.hbm [shape: f32[8,30], index: 5, kind: output, shape index: {}]
  %s6 = sld [smem:[#allocation0]]
  $region38: #{tpu_custom_call.1} parent=0
    _
  %s8 = ssub.s32 1, %s6
  %s9 = scalar_select 0, %s8, %s6
  $region1: #{tpu_custom_call.1} parent=0
    #allocation2 [shape = 'u8[4096]{0}', space=vmem, size = 0x1000, scoped, tag = 'input window, operand 0, single buffered']
    #allocation3 [shape = 's32[1]{0}', space=sflag, size = 0x4, scoped, tag = 'scoped memory for tpu_custom_call.1']
    #allocation4 [shape = 's32[1]{0}', space=sflag, size = 0x4, scoped, tag = 'scoped memory for tpu_custom_call.1']
    #allocation5 [shape = 'u8[131072]{0}', space=vmem, size = 0x20000, scoped, tag = 'input window, operand 1, single buffered']
    #allocation6 [shape = 's32[1]{0}', space=sflag, size = 0x4, scoped, tag = 'scoped memory for tpu_custom_call.1']
    #allocation7 [shape = 'u8[4096]{0}', space=vmem, size = 0x1000, scoped, tag = 'output window, operand 0, single buffered']
    %10 = vsyncpa [#allocation3], 0
    %11 = vsyncpa [#allocation6], 0
    %12 = vsyncpa [#allocation4], 0
    // Predicated region
    $region2: #{tpu_custom_call.1} parent=1 // pred_check
      _
    $region3: #{tpu_custom_call.1} parent=1 // pred_check_branch
      %14 = sbr.rel (0) target = $region5
    $region4: #{tpu_custom_call.1} parent=1 // pred_region
      %s16 = ssub.s32 128, 128
      %17 = vsyncadd [#allocation3], %s16
      %s19 = sshll.u32 [#allocation2], 4
      %s20 = int_to_ptr.vmem [resolvable:$true] %s19
      %22 = dma.hbm_to_vmem [thread:$0]  %s0, 128, %s20, [#allocation3]
    $region5: #{tpu_custom_call.1} parent=1 // pred_fallthru
      _
    // Predicated region
    $region6: #{tpu_custom_call.1} parent=1 // pred_check
      _
    $region7: #{tpu_custom_call.1} parent=1 // pred_check_branch
      %24 = sbr.rel (0) target = $region9
    $region8: #{tpu_custom_call.1} parent=1 // pred_region
      %s26 = ssub.s32 4096, 4096
      %27 = vsyncadd [#allocation6], %s26
      %s28 = sshll.u32 [#allocation5], 4
      %s29 = int_to_ptr.vmem [resolvable:$true] %s28
      %34 = dma.hbm_to_vmem [thread:$0]  %s1, 4096, %s29, [#allocation6], 128, 128, 8
    $region9: #{tpu_custom_call.1} parent=1 // pred_fallthru
      _
    // Predicated region
    $region10: #{tpu_custom_call.1} parent=1 // pred_check
      _
    $region11: #{tpu_custom_call.1} parent=1 // pred_check_branch
      %36 = sbr.rel (0) target = $region13
    $region12: #{tpu_custom_call.1} parent=1 // pred_region
      _
    $region13: #{tpu_custom_call.1} parent=1 // pred_fallthru
      _
    // Predicated region
    $region14: #{tpu_custom_call.1} parent=1 // pred_check
      _
    $region15: #{tpu_custom_call.1} parent=1 // pred_check_branch
      %38 = sbr.rel (0) target = $region17
    $region16: #{tpu_custom_call.1} parent=1 // pred_region
      _
    $region17: #{tpu_custom_call.1} parent=1 // pred_fallthru
      _
    // Predicated region
    $region18: #{tpu_custom_call.1} parent=1 // pred_check
      _
    $region19: #{tpu_custom_call.1} parent=1 // pred_check_branch
      %40 = sbr.rel (0) target = $region21
    $region20: #{tpu_custom_call.1} parent=1 // pred_region
      _
    $region21: #{tpu_custom_call.1} parent=1 // pred_fallthru
      _
    // Predicated region
    $region22: #{tpu_custom_call.1} parent=1 // pred_check
      _
    $region23: #{tpu_custom_call.1} parent=1 // pred_check_branch
      %42 = sbr.rel (0) target = $region25
    $region24: #{tpu_custom_call.1} parent=1 // pred_region
      %43 = dma.done [#allocation3], 128
    $region25: #{tpu_custom_call.1} parent=1 // pred_fallthru
      _
    // Predicated region
    $region26: #{tpu_custom_call.1} parent=1 // pred_check
      _
    $region27: #{tpu_custom_call.1} parent=1 // pred_check_branch
      %45 = sbr.rel (0) target = $region29
    $region28: #{tpu_custom_call.1} parent=1 // pred_region
      %46 = dma.done [#allocation6], 4096
    $region29: #{tpu_custom_call.1} parent=1 // pred_fallthru
      _
    %v47 = vld [vmem:[#allocation2] sm:$0xff]
    %v48 = vld [vmem:[#allocation5] sm:$0xff]
    %v49 = vld [vmem:[#allocation5 + $0x8] sm:$0xff]
    %v50 = vld [vmem:[#allocation5 + $0x10] sm:$0xff]
    %v51 = vld [vmem:[#allocation5 + $0x18] sm:$0xff]
    %v52 = vld [vmem:[%s2] sm:$0x1]
    %v53 = vld [vmem:[%s3] sm:$0x1]
    %v54 = vld [vmem:[%s4] sm:$0x1]
    %v55 = vlaneseq
    %v56 = vshrl.u32 %v55, 7
    %v57 = vsub.s32 0, %v56
    %v58 = vrot.slane %v52, %v57
    %vm59 = vcmask 244736
    %v61 = vsel %vm59, %v47, 0
    %vm63 = vcmask 1045504
    %v65 = vsel %vm63, %v51, 0
    %67 = vmatprep.subr.mxu0 0.0
    %68 = vmatpush1.msra.mxu0 %v48
    %69 = vmatprep.subr.mxu0 0.0
    %70 = vmatpush1.msra.mxu0 %v49
    %71 = vmatprep.subr.mxu0 0.0
    %72 = vmatpush1.msra.mxu0 %v50
    %73 = vmatprep.subr.mxu0 0.0
    %74 = vmatpush1.msra.mxu0 %v65
    %75 = vmatprep.subr.mxu0 0.0
    %76 = vmatpush1.msra.mxu0 0.0
    %77 = vmatprep.subr.mxu0 0.0
    %78 = vmatpush1.msra.mxu0 0.0
    %79 = vmatprep.subr.mxu0 0.0
    %80 = vmatpush1.msra.mxu0 0.0
    %81 = vmatprep.subr.mxu0 0.0
    %82 = vmatpush1.msra.mxu0 0.0
    %83 = vmatprep.subr.mxu0 0.0
    %84 = vmatpush1.msra.mxu0 0.0
    %85 = vmatprep.subr.mxu0 0.0
    %86 = vmatpush1.msra.mxu0 0.0
    %87 = vmatprep.subr.mxu0 0.0
    %88 = vmatpush1.msra.mxu0 0.0
    %89 = vmatprep.subr.mxu0 0.0
    %90 = vmatpush1.msra.mxu0 0.0
    %91 = vmatprep.subr.mxu0 0.0
    %92 = vmatpush1.msra.mxu0 0.0
    %93 = vmatprep.subr.mxu0 0.0
    %94 = vmatpush1.msra.mxu0 0.0
    %95 = vmatprep.subr.mxu0 0.0
    %96 = vmatpush1.msra.mxu0 0.0
    %97 = vmatprep.subr.mxu0 0.0
    %98 = vmatpush1.msra.mxu0 0.0
    %99 = vmatprep.subr.mxu0 0.0
    %100 = vmatpush1.msra.mxu0 0.0
    %101 = vmatprep.subr.mxu0 0.0
    %102 = vmatpush1.msra.mxu0 0.0
    %103 = vmatprep.subr.mxu0 0.0
    %104 = vmatpush1.msra.mxu0 0.0
    %105 = vmatprep.subr.mxu0 0.0
    %106 = vmatpush1.msra.mxu0 0.0
    %107 = vmatprep.subr.mxu0 0.0
    %108 = vmatpush1.msra.mxu0 0.0
    %109 = vmatprep.subr.mxu0 0.0
    %110 = vmatpush1.msra.mxu0 0.0
    %111 = vmatprep.subr.mxu0 0.0
    %112 = vmatpush1.msra.mxu0 0.0
    %113 = vmatprep.subr.mxu0 0.0
    %114 = vmatpush1.msra.mxu0 0.0
    %115 = vmatprep.subr.mxu0 0.0
    %116 = vmatpush1.msra.mxu0 0.0
    %117 = vmatprep.subr.mxu0 0.0
    %118 = vmatpush1.msra.mxu0 0.0
    %119 = vmatprep.subr.mxu0 0.0
    %120 = vmatpush1.msra.mxu0 0.0
    %121 = vmatprep.subr.mxu0 0.0
    %122 = vmatpush1.msra.mxu0 0.0
    %123 = vmatprep.subr.mxu0 0.0
    %124 = vmatpush1.msra.mxu0 0.0
    %125 = vmatprep.subr.mxu0 0.0
    %126 = vmatpush1.msra.mxu0 0.0
    %127 = vmatprep.subr.mxu0 0.0
    %128 = vmatpush1.msra.mxu0 0.0
    %129 = vmatprep.subr.mxu0 0.0
    %130 = vmatpush1.msra.mxu0 0.0
    %131 = vmatprep.mubr.f32.mxu0 0.0
    %132 = vmatmul.mubr.f32.gmra.mrb[0].mxu0 %v61
    %v133 = vpop.f32.mrb[0].mxu0
    %v134 = vadd.f32 %v58, %v133
    %v135 = vpop.f32.mrb[0].mxu0
    %136 = vdwg.mxu0
    %137 = vmatprep.subr.mxu0 0.0
    %138 = vmatpush1.msra.mxu0 1.0
    %139 = vmatprep.subr.mxu0 0.0
    %140 = vmatpush1.msra.mxu0 1.0
    %141 = vmatprep.subr.mxu0 0.0
    %142 = vmatpush1.msra.mxu0 1.0
    %143 = vmatprep.subr.mxu0 0.0
    %144 = vmatpush1.msra.mxu0 1.0
    %145 = vmatprep.subr.mxu0 0.0
    %146 = vmatpush1.msra.mxu0 1.0
    %147 = vmatprep.subr.mxu0 0.0
    %148 = vmatpush1.msra.mxu0 1.0
    %149 = vmatprep.subr.mxu0 0.0
    %150 = vmatpush1.msra.mxu0 1.0
    %151 = vmatprep.subr.mxu0 0.0
    %152 = vmatpush1.msra.mxu0 1.0
    %153 = vmatprep.subr.mxu0 0.0
    %154 = vmatpush1.msra.mxu0 1.0
    %155 = vmatprep.subr.mxu0 0.0
    %156 = vmatpush1.msra.mxu0 1.0
    %157 = vmatprep.subr.mxu0 0.0
    %158 = vmatpush1.msra.mxu0 1.0
    %159 = vmatprep.subr.mxu0 0.0
    %160 = vmatpush1.msra.mxu0 1.0
    %161 = vmatprep.subr.mxu0 0.0
    %162 = vmatpush1.msra.mxu0 1.0
    %163 = vmatprep.subr.mxu0 0.0
    %164 = vmatpush1.msra.mxu0 1.0
    %165 = vmatprep.subr.mxu0 0.0
    %166 = vmatpush1.msra.mxu0 1.0
    %167 = vmatprep.subr.mxu0 0.0
    %168 = vmatpush1.msra.mxu0 1.0
    %169 = vmatprep.subr.mxu0 0.0
    %170 = vmatpush1.msra.mxu0 0.0
    %171 = vmatprep.subr.mxu0 0.0
    %172 = vmatpush1.msra.mxu0 0.0
    %173 = vmatprep.subr.mxu0 0.0
    %174 = vmatpush1.msra.mxu0 0.0
    %175 = vmatprep.subr.mxu0 0.0
    %176 = vmatpush1.msra.mxu0 0.0
    %177 = vmatprep.subr.mxu0 0.0
    %178 = vmatpush1.msra.mxu0 0.0
    %179 = vmatprep.subr.mxu0 0.0
    %180 = vmatpush1.msra.mxu0 0.0
    %181 = vmatprep.subr.mxu0 0.0
    %182 = vmatpush1.msra.mxu0 0.0
    %183 = vmatprep.subr.mxu0 0.0
    %184 = vmatpush1.msra.mxu0 0.0
    %185 = vmatprep.subr.mxu0 0.0
    %186 = vmatpush1.msra.mxu0 0.0
    %187 = vmatprep.subr.mxu0 0.0
    %188 = vmatpush1.msra.mxu0 0.0
    %189 = vmatprep.subr.mxu0 0.0
    %190 = vmatpush1.msra.mxu0 0.0
    %191 = vmatprep.subr.mxu0 0.0
    %192 = vmatpush1.msra.mxu0 0.0
    %193 = vmatprep.subr.mxu0 0.0
    %194 = vmatpush1.msra.mxu0 0.0
    %195 = vmatprep.subr.mxu0 0.0
    %196 = vmatpush1.msra.mxu0 0.0
    %197 = vmatprep.subr.mxu0 0.0
    %198 = vmatpush1.msra.mxu0 0.0
    %199 = vmatprep.subr.mxu0 0.0
    %200 = vmatpush1.msra.mxu0 0.0
    %201 = vmatprep.mubr.f32.mxu0 0.0
    %202 = vmatmul.mubr.f32.gmra.mrb[0].mxu0 %v134
    %v203 = vpop.f32.mrb[0].mxu0
    %v204 = vadd.f32 0.0, %v203
    %v205 = vpop.f32.mrb[0].mxu0
    %206 = vdwg.mxu0
    %v207 = vmul.f32 %v134, %v134
    %208 = vmatprep.subr.mxu0 0.0
    %209 = vmatpush1.msra.mxu0 1.0
    %210 = vmatprep.subr.mxu0 0.0
    %211 = vmatpush1.msra.mxu0 1.0
    %212 = vmatprep.subr.mxu0 0.0
    %213 = vmatpush1.msra.mxu0 1.0
    %214 = vmatprep.subr.mxu0 0.0
    %215 = vmatpush1.msra.mxu0 1.0
    %216 = vmatprep.subr.mxu0 0.0
    %217 = vmatpush1.msra.mxu0 1.0
    %218 = vmatprep.subr.mxu0 0.0
    %219 = vmatpush1.msra.mxu0 1.0
    %220 = vmatprep.subr.mxu0 0.0
    %221 = vmatpush1.msra.mxu0 1.0
    %222 = vmatprep.subr.mxu0 0.0
    %223 = vmatpush1.msra.mxu0 1.0
    %224 = vmatprep.subr.mxu0 0.0
    %225 = vmatpush1.msra.mxu0 1.0
    %226 = vmatprep.subr.mxu0 0.0
    %227 = vmatpush1.msra.mxu0 1.0
    %228 = vmatprep.subr.mxu0 0.0
    %229 = vmatpush1.msra.mxu0 1.0
    %230 = vmatprep.subr.mxu0 0.0
    %231 = vmatpush1.msra.mxu0 1.0
    %232 = vmatprep.subr.mxu0 0.0
    %233 = vmatpush1.msra.mxu0 1.0
    %234 = vmatprep.subr.mxu0 0.0
    %235 = vmatpush1.msra.mxu0 1.0
    %236 = vmatprep.subr.mxu0 0.0
    %237 = vmatpush1.msra.mxu0 1.0
    %238 = vmatprep.subr.mxu0 0.0
    %239 = vmatpush1.msra.mxu0 1.0
    %240 = vmatprep.subr.mxu0 0.0
    %241 = vmatpush1.msra.mxu0 0.0
    %242 = vmatprep.subr.mxu0 0.0
    %243 = vmatpush1.msra.mxu0 0.0
    %244 = vmatprep.subr.mxu0 0.0
    %245 = vmatpush1.msra.mxu0 0.0
    %246 = vmatprep.subr.mxu0 0.0
    %247 = vmatpush1.msra.mxu0 0.0
    %248 = vmatprep.subr.mxu0 0.0
    %249 = vmatpush1.msra.mxu0 0.0
    %250 = vmatprep.subr.mxu0 0.0
    %251 = vmatpush1.msra.mxu0 0.0
    %252 = vmatprep.subr.mxu0 0.0
    %253 = vmatpush1.msra.mxu0 0.0
    %254 = vmatprep.subr.mxu0 0.0
    %255 = vmatpush1.msra.mxu0 0.0
    %256 = vmatprep.subr.mxu0 0.0
    %257 = vmatpush1.msra.mxu0 0.0
    %258 = vmatprep.subr.mxu0 0.0
    %259 = vmatpush1.msra.mxu0 0.0
    %260 = vmatprep.subr.mxu0 0.0
    %261 = vmatpush1.msra.mxu0 0.0
    %262 = vmatprep.subr.mxu0 0.0
    %263 = vmatpush1.msra.mxu0 0.0
    %264 = vmatprep.subr.mxu0 0.0
    %265 = vmatpush1.msra.mxu0 0.0
    %266 = vmatprep.subr.mxu0 0.0
    %267 = vmatpush1.msra.mxu0 0.0
    %268 = vmatprep.subr.mxu0 0.0
    %269 = vmatpush1.msra.mxu0 0.0
    %270 = vmatprep.subr.mxu0 0.0
    %271 = vmatpush1.msra.mxu0 0.0
    %272 = vmatprep.mubr.f32.mxu0 0.0
    %273 = vmatmul.mubr.f32.gmra.mrb[0].mxu0 %v207
    %v274 = vpop.f32.mrb[0].mxu0
    %v275 = vadd.f32 0.0, %v274
    %v276 = vpop.f32.mrb[0].mxu0
    %277 = vdwg.mxu0
    %v278 = vmul.f32 %v204, 0.033333335
    %v279 = vmul.f32 %v275, 0.033333335
    %v280 = vmul.f32 %v278, %v278
    %v281 = vsub.f32 %v279, %v280
    %283 = vset.pattern.permute.xlu0 0
    %284 = vperm.xlu0 %283, %v278
    %v285 = vpop.permute.xlu0 %284
    %v287 = vsub.f32 %v134, %v285
    %v288 = vadd.f32 %v281, 1e-05
    %v289 = vrsqrt.pop %v288
    %291 = vset.pattern.permute.xlu0 0
    %292 = vperm.xlu0 %291, %v289
    %v293 = vpop.permute.xlu0 %292
    %v295 = vmul.f32 %v287, %v293
    %v296 = vlaneseq
    %v297 = vshrl.u32 %v296, 7
    %v298 = vsub.s32 0, %v297
    %v299 = vrot.slane %v53, %v298
    %v300 = vmul.f32 %v295, %v299
    %v301 = vlaneseq
    %v302 = vshrl.u32 %v301, 7
    %v303 = vsub.s32 0, %v302
    %v304 = vrot.slane %v54, %v303
    %v305 = vadd.f32 %v300, %v304
    %v306 = vmax.f32 %v305, 0.0
    %s307 = scalar_lea.vmem [#allocation5], 128
    %v308 = vld [vmem:[%s307] sm:$0xff]
    %v309 = vld [vmem:[%s307 + $0x8] sm:$0xff]
    %v310 = vld [vmem:[%s307 + $0x10] sm:$0xff]
    %v311 = vld [vmem:[%s307 + $0x18] sm:$0xff]
    %v312 = vld [vmem:[%s307 + $0x20] sm:$0xff]
    %v313 = vld [vmem:[%s307 + $0x28] sm:$0xff]
    %v314 = vld [vmem:[%s307 + $0x30] sm:$0xff]
    %v315 = vld [vmem:[%s307 + $0x38] sm:$0xff]
    %v316 = vld [vmem:[%s307 + $0x40] sm:$0xff]
    %v317 = vld [vmem:[%s307 + $0x48] sm:$0xff]
    %v318 = vld [vmem:[%s307 + $0x50] sm:$0xff]
    %v319 = vld [vmem:[%s307 + $0x58] sm:$0xff]
    %v320 = vld [vmem:[%s307 + $0x60] sm:$0xff]
    %v321 = vld [vmem:[%s307 + $0x68] sm:$0xff]
    %v322 = vld [vmem:[%s307 + $0x70] sm:$0xff]
    %v323 = vld [vmem:[%s307 + $0x78] sm:$0xff]
    %v324 = vld [vmem:[%s2 + $0x1] sm:$0x1]
    %v325 = vld [vmem:[%s3 + $0x1] sm:$0x1]
    %v326 = vld [vmem:[%s4 + $0x1] sm:$0x1]
    %v327 = vlaneseq
    %v328 = vshrl.u32 %v327, 7
    %v329 = vsub.s32 0, %v328
    %v330 = vrot.slane %v324, %v329
    %331 = vmatprep.subr.mxu0 0.0
    %332 = vmatpush1.msra.mxu0 %v308
    %333 = vmatprep.subr.mxu0 0.0
    %334 = vmatpush1.msra.mxu0 %v309
    %335 = vmatprep.subr.mxu0 0.0
    %336 = vmatpush1.msra.mxu0 %v310
    %337 = vmatprep.subr.mxu0 0.0
    %338 = vmatpush1.msra.mxu0 %v311
    %339 = vmatprep.subr.mxu0 0.0
    %340 = vmatpush1.msra.mxu0 %v312
    %341 = vmatprep.subr.mxu0 0.0
    %342 = vmatpush1.msra.mxu0 %v313
    %343 = vmatprep.subr.mxu0 0.0
    %344 = vmatpush1.msra.mxu0 %v314
    %345 = vmatprep.subr.mxu0 0.0
    %346 = vmatpush1.msra.mxu0 %v315
    %347 = vmatprep.subr.mxu0 0.0
    %348 = vmatpush1.msra.mxu0 %v316
    %349 = vmatprep.subr.mxu0 0.0
    %350 = vmatpush1.msra.mxu0 %v317
    %351 = vmatprep.subr.mxu0 0.0
    %352 = vmatpush1.msra.mxu0 %v318
    %353 = vmatprep.subr.mxu0 0.0
    %354 = vmatpush1.msra.mxu0 %v319
    %355 = vmatprep.subr.mxu0 0.0
    %356 = vmatpush1.msra.mxu0 %v320
    %357 = vmatprep.subr.mxu0 0.0
    %358 = vmatpush1.msra.mxu0 %v321
    %359 = vmatprep.subr.mxu0 0.0
    %360 = vmatpush1.msra.mxu0 %v322
    %361 = vmatprep.subr.mxu0 0.0
    %362 = vmatpush1.msra.mxu0 %v323
    %363 = vmatprep.subr.mxu0 0.0
    %364 = vmatpush1.msra.mxu0 0.0
    %365 = vmatprep.subr.mxu0 0.0
    %366 = vmatpush1.msra.mxu0 0.0
    %367 = vmatprep.subr.mxu0 0.0
    %368 = vmatpush1.msra.mxu0 0.0
    %369 = vmatprep.subr.mxu0 0.0
    %370 = vmatpush1.msra.mxu0 0.0
    %371 = vmatprep.subr.mxu0 0.0
    %372 = vmatpush1.msra.mxu0 0.0
    %373 = vmatprep.subr.mxu0 0.0
    %374 = vmatpush1.msra.mxu0 0.0
    %375 = vmatprep.subr.mxu0 0.0
    %376 = vmatpush1.msra.mxu0 0.0
    %377 = vmatprep.subr.mxu0 0.0
    %378 = vmatpush1.msra.mxu0 0.0
    %379 = vmatprep.subr.mxu0 0.0
    %380 = vmatpush1.msra.mxu0 0.0
    %381 = vmatprep.subr.mxu0 0.0
    %382 = vmatpush1.msra.mxu0 0.0
    %383 = vmatprep.subr.mxu0 0.0
    %384 = vmatpush1.msra.mxu0 0.0
    %385 = vmatprep.subr.mxu0 0.0
    %386 = vmatpush1.msra.mxu0 0.0
    %387 = vmatprep.subr.mxu0 0.0
    %388 = vmatpush1.msra.mxu0 0.0
    %389 = vmatprep.subr.mxu0 0.0
    %390 = vmatpush1.msra.mxu0 0.0
    %391 = vmatprep.subr.mxu0 0.0
    %392 = vmatpush1.msra.mxu0 0.0
    %393 = vmatprep.subr.mxu0 0.0
    %394 = vmatpush1.msra.mxu0 0.0
    %395 = vmatprep.mubr.f32.mxu0 0.0
    %396 = vmatmul.mubr.f32.gmra.mrb[0].mxu0 %v306
    %v397 = vpop.f32.mrb[0].mxu0
    %v398 = vadd.f32 %v330, %v397
    %v399 = vpop.f32.mrb[0].mxu0
    %400 = vdwg.mxu0
    %401 = vmatprep.subr.mxu0 0.0
    %402 = vmatpush1.msra.mxu0 1.0
    %403 = vmatprep.subr.mxu0 0.0
    %404 = vmatpush1.msra.mxu0 1.0
    %405 = vmatprep.subr.mxu0 0.0
    %406 = vmatpush1.msra.mxu0 1.0
    %407 = vmatprep.subr.mxu0 0.0
    %408 = vmatpush1.msra.mxu0 1.0
    %409 = vmatprep.subr.mxu0 0.0
    %410 = vmatpush1.msra.mxu0 1.0
    %411 = vmatprep.subr.mxu0 0.0
    %412 = vmatpush1.msra.mxu0 1.0
    %413 = vmatprep.subr.mxu0 0.0
    %414 = vmatpush1.msra.mxu0 1.0
    %415 = vmatprep.subr.mxu0 0.0
    %416 = vmatpush1.msra.mxu0 1.0
    %417 = vmatprep.subr.mxu0 0.0
    %418 = vmatpush1.msra.mxu0 1.0
    %419 = vmatprep.subr.mxu0 0.0
    %420 = vmatpush1.msra.mxu0 1.0
    %421 = vmatprep.subr.mxu0 0.0
    %422 = vmatpush1.msra.mxu0 1.0
    %423 = vmatprep.subr.mxu0 0.0
    %424 = vmatpush1.msra.mxu0 1.0
    %425 = vmatprep.subr.mxu0 0.0
    %426 = vmatpush1.msra.mxu0 1.0
    %427 = vmatprep.subr.mxu0 0.0
    %428 = vmatpush1.msra.mxu0 1.0
    %429 = vmatprep.subr.mxu0 0.0
    %430 = vmatpush1.msra.mxu0 1.0
    %431 = vmatprep.subr.mxu0 0.0
    %432 = vmatpush1.msra.mxu0 1.0
    %433 = vmatprep.subr.mxu0 0.0
    %434 = vmatpush1.msra.mxu0 0.0
    %435 = vmatprep.subr.mxu0 0.0
    %436 = vmatpush1.msra.mxu0 0.0
    %437 = vmatprep.subr.mxu0 0.0
    %438 = vmatpush1.msra.mxu0 0.0
    %439 = vmatprep.subr.mxu0 0.0
    %440 = vmatpush1.msra.mxu0 0.0
    %441 = vmatprep.subr.mxu0 0.0
    %442 = vmatpush1.msra.mxu0 0.0
    %443 = vmatprep.subr.mxu0 0.0
    %444 = vmatpush1.msra.mxu0 0.0
    %445 = vmatprep.subr.mxu0 0.0
    %446 = vmatpush1.msra.mxu0 0.0
    %447 = vmatprep.subr.mxu0 0.0
    %448 = vmatpush1.msra.mxu0 0.0
    %449 = vmatprep.subr.mxu0 0.0
    %450 = vmatpush1.msra.mxu0 0.0
    %451 = vmatprep.subr.mxu0 0.0
    %452 = vmatpush1.msra.mxu0 0.0
    %453 = vmatprep.subr.mxu0 0.0
    %454 = vmatpush1.msra.mxu0 0.0
    %455 = vmatprep.subr.mxu0 0.0
    %456 = vmatpush1.msra.mxu0 0.0
    %457 = vmatprep.subr.mxu0 0.0
    %458 = vmatpush1.msra.mxu0 0.0
    %459 = vmatprep.subr.mxu0 0.0
    %460 = vmatpush1.msra.mxu0 0.0
    %461 = vmatprep.subr.mxu0 0.0
    %462 = vmatpush1.msra.mxu0 0.0
    %463 = vmatprep.subr.mxu0 0.0
    %464 = vmatpush1.msra.mxu0 0.0
    %465 = vmatprep.mubr.f32.mxu0 0.0
    %466 = vmatmul.mubr.f32.gmra.mrb[0].mxu0 %v398
    %v467 = vpop.f32.mrb[0].mxu0
    %v468 = vadd.f32 0.0, %v467
    %v469 = vpop.f32.mrb[0].mxu0
    %470 = vdwg.mxu0
    %v471 = vmul.f32 %v398, %v398
    %472 = vmatprep.subr.mxu0 0.0
    %473 = vmatpush1.msra.mxu0 1.0
    %474 = vmatprep.subr.mxu0 0.0
    %475 = vmatpush1.msra.mxu0 1.0
    %476 = vmatprep.subr.mxu0 0.0
    %477 = vmatpush1.msra.mxu0 1.0
    %478 = vmatprep.subr.mxu0 0.0
    %479 = vmatpush1.msra.mxu0 1.0
    %480 = vmatprep.subr.mxu0 0.0
    %481 = vmatpush1.msra.mxu0 1.0
    %482 = vmatprep.subr.mxu0 0.0
    %483 = vmatpush1.msra.mxu0 1.0
    %484 = vmatprep.subr.mxu0 0.0
    %485 = vmatpush1.msra.mxu0 1.0
    %486 = vmatprep.subr.mxu0 0.0
    %487 = vmatpush1.msra.mxu0 1.0
    %488 = vmatprep.subr.mxu0 0.0
    %489 = vmatpush1.msra.mxu0 1.0
    %490 = vmatprep.subr.mxu0 0.0
    %491 = vmatpush1.msra.mxu0 1.0
    %492 = vmatprep.subr.mxu0 0.0
    %493 = vmatpush1.msra.mxu0 1.0
    %494 = vmatprep.subr.mxu0 0.0
    %495 = vmatpush1.msra.mxu0 1.0
    %496 = vmatprep.subr.mxu0 0.0
    %497 = vmatpush1.msra.mxu0 1.0
    %498 = vmatprep.subr.mxu0 0.0
    %499 = vmatpush1.msra.mxu0 1.0
    %500 = vmatprep.subr.mxu0 0.0
    %501 = vmatpush1.msra.mxu0 1.0
    %502 = vmatprep.subr.mxu0 0.0
    %503 = vmatpush1.msra.mxu0 1.0
    %504 = vmatprep.subr.mxu0 0.0
    %505 = vmatpush1.msra.mxu0 0.0
    %506 = vmatprep.subr.mxu0 0.0
    %507 = vmatpush1.msra.mxu0 0.0
    %508 = vmatprep.subr.mxu0 0.0
    %509 = vmatpush1.msra.mxu0 0.0
    %510 = vmatprep.subr.mxu0 0.0
    %511 = vmatpush1.msra.mxu0 0.0
    %512 = vmatprep.subr.mxu0 0.0
    %513 = vmatpush1.msra.mxu0 0.0
    %514 = vmatprep.subr.mxu0 0.0
    %515 = vmatpush1.msra.mxu0 0.0
    %516 = vmatprep.subr.mxu0 0.0
    %517 = vmatpush1.msra.mxu0 0.0
    %518 = vmatprep.subr.mxu0 0.0
    %519 = vmatpush1.msra.mxu0 0.0
    %520 = vmatprep.subr.mxu0 0.0
    %521 = vmatpush1.msra.mxu0 0.0
    %522 = vmatprep.subr.mxu0 0.0
    %523 = vmatpush1.msra.mxu0 0.0
    %524 = vmatprep.subr.mxu0 0.0
    %525 = vmatpush1.msra.mxu0 0.0
    %526 = vmatprep.subr.mxu0 0.0
    %527 = vmatpush1.msra.mxu0 0.0
    %528 = vmatprep.subr.mxu0 0.0
    %529 = vmatpush1.msra.mxu0 0.0
    %530 = vmatprep.subr.mxu0 0.0
    %531 = vmatpush1.msra.mxu0 0.0
    %532 = vmatprep.subr.mxu0 0.0
    %533 = vmatpush1.msra.mxu0 0.0
    %534 = vmatprep.subr.mxu0 0.0
    %535 = vmatpush1.msra.mxu0 0.0
    %536 = vmatprep.mubr.f32.mxu0 0.0
    %537 = vmatmul.mubr.f32.gmra.mrb[0].mxu0 %v471
    %v538 = vpop.f32.mrb[0].mxu0
    %v539 = vadd.f32 0.0, %v538
    %v540 = vpop.f32.mrb[0].mxu0
    %541 = vdwg.mxu0
    %v542 = vmul.f32 %v468, 0.033333335
    %v543 = vmul.f32 %v539, 0.033333335
    %v544 = vmul.f32 %v542, %v542
    %v545 = vsub.f32 %v543, %v544
    %547 = vset.pattern.permute.xlu0 0
    %548 = vperm.xlu0 %547, %v542
    %v549 = vpop.permute.xlu0 %548
    %v551 = vsub.f32 %v398, %v549
    %v552 = vadd.f32 %v545, 1e-05
    %v553 = vrsqrt.pop %v552
    %555 = vset.pattern.permute.xlu0 0
    %556 = vperm.xlu0 %555, %v553
    %v557 = vpop.permute.xlu0 %556
    %v559 = vmul.f32 %v551, %v557
    %v560 = vlaneseq
    %v561 = vshrl.u32 %v560, 7
    %v562 = vsub.s32 0, %v561
    %v563 = vrot.slane %v325, %v562
    %v564 = vmul.f32 %v559, %v563
    %v565 = vlaneseq
    %v566 = vshrl.u32 %v565, 7
    %v567 = vsub.s32 0, %v566
    %v568 = vrot.slane %v326, %v567
    %v569 = vadd.f32 %v564, %v568
    %v570 = vmax.f32 %v569, 0.0
    %v571 = vadd.f32 %v47, %v570
    %572 = vst.msk [vmem:[#allocation7] sm:$0xff] %vm59, %v571
    // Predicated region
    $region30: #{tpu_custom_call.1} parent=1 // pred_check
      _
    $region31: #{tpu_custom_call.1} parent=1 // pred_check_branch
      %574 = sbr.rel (0) target = $region33
    $region32: #{tpu_custom_call.1} parent=1 // pred_region
      %s576 = ssub.s32 128, 128
      %577 = vsyncadd [#allocation4], %s576
      %s579 = sshll.u32 [#allocation7], 4
      %s580 = int_to_ptr.vmem [resolvable:$true] %s579
      %582 = dma.vmem_to_hbm [thread:$0]  %s580, 128, %s5, [#allocation4]
    $region33: #{tpu_custom_call.1} parent=1 // pred_fallthru
      _
    // Predicated region
    $region34: #{tpu_custom_call.1} parent=1 // pred_check
      _
    $region35: #{tpu_custom_call.1} parent=1 // pred_check_branch
      %584 = sbr.rel (0) target = $region37
    $region36: #{tpu_custom_call.1} parent=1 // pred_region
      %585 = dma.done [#allocation4], 128
    $region37: #{tpu_custom_call.1} parent=1 // pred_fallthru
      _
    %586 = vsyncpa [#allocation3], 1
    %587 = vsyncpa [#allocation6], 1
    %588 = vsyncpa [#allocation4], 1

</llo_original>
